<compile_context>
chip_gen: v5e
topology: v5e:2x2
jax: 0.10.0
libtpu: 0.0.40
codegen_flags: <defaults>
</compile_context>

<pallas_src>
import functools

import jax
import jax.numpy as jnp
from jax import lax
from jax.experimental import pallas as pl
from jax.experimental.pallas import tpu as pltpu


def _round_up(x: int, m: int) -> int:
    return ((x + m - 1) // m) * m


def _dot_nt(x, w):
    # x: (tm, tk), w: (tn, tk) -> (tm, tn); contract K against K.
    return lax.dot_general(
        x, w,
        dimension_numbers=(((1,), (1,)), ((), ())),
        preferred_element_type=jnp.float32,
    )


# ---- single K-step kernels (no accumulator scratch needed) -----------------
def _kernel_single_bias(x_ref, w_ref, b_ref, o_ref):
    o_ref[...] = (_dot_nt(x_ref[...], w_ref[...]) + b_ref[...]).astype(o_ref.dtype)


def _kernel_single_nobias(x_ref, w_ref, o_ref):
    o_ref[...] = _dot_nt(x_ref[...], w_ref[...]).astype(o_ref.dtype)


# ---- multi K-step kernels (f32 accumulator resident across K) --------------
def _kernel_multi_bias(x_ref, w_ref, b_ref, o_ref, acc_ref):
    k = pl.program_id(2)
    part = _dot_nt(x_ref[...], w_ref[...])

    @pl.when(k == 0)
    def _():
        acc_ref[...] = part                  # direct assign: no zero + add

    @pl.when(k != 0)
    def _():
        acc_ref[...] += part

    @pl.when(k == pl.num_programs(2) - 1)
    def _():
        o_ref[...] = (acc_ref[...] + b_ref[...]).astype(o_ref.dtype)


def _kernel_multi_nobias(x_ref, w_ref, o_ref, acc_ref):
    k = pl.program_id(2)
    part = _dot_nt(x_ref[...], w_ref[...])

    @pl.when(k == 0)
    def _():
        acc_ref[...] = part

    @pl.when(k != 0)
    def _():
        acc_ref[...] += part

    @pl.when(k == pl.num_programs(2) - 1)
    def _():
        o_ref[...] = acc_ref[...].astype(o_ref.dtype)


@functools.partial(jax.jit, static_argnames=("tm", "tn", "tk", "compute_dtype"))
def column_parallel_linear(x, weight, bias=None, *, tm=None, tn=None, tk=None,
                           compute_dtype=None):
    """Y = x @ weight.T + bias  (single-partition column-parallel linear).

    weight: (out_features, in_features); bias: (out_features,) or None.
    compute_dtype: optionally cast operands (e.g. jnp.bfloat16) for the MXU;
    accumulation stays f32 and the output keeps x's dtype.
    """
    orig_shape = x.shape
    N, K = weight.shape
    assert orig_shape[-1] == K

    out_dtype = x.dtype
    x2d = x.reshape(-1, K)
    M = x2d.shape[0]
    has_bias = bias is not None

    if compute_dtype is not None:
        x2d = x2d.astype(compute_dtype)
        weight = weight.astype(compute_dtype)

    # VMEM-aware tile defaults (f32-safe on v7x's 64 MiB VMEM); tn/tk are
    # multiples of 128 -> lane-dense stores and well-fed MXU; tm multiple of 8.
    tm = tm or min(256, _round_up(M, 8))
    tn = tn or min(512, _round_up(N, 128))
    tk = tk or min(512, _round_up(K, 128))

    Mp, Np, Kp = _round_up(M, tm), _round_up(N, tn), _round_up(K, tk)

    # Zero-pad to tile multiples (K zeros contribute nothing to the dot;
    # padded M rows / N cols are sliced off after the call).
    if (Mp, Kp) != (M, K):
        x2d = jnp.pad(x2d, ((0, Mp - M), (0, Kp - K)))
    w = weight
    if (Np, Kp) != (N, K):
        w = jnp.pad(w, ((0, Np - N), (0, Kp - K)))

    operands = [x2d, w]
    if has_bias:
        b2d = bias.astype(jnp.float32).reshape(1, N)
        if Np != N:
            b2d = jnp.pad(b2d, ((0, 0), (0, Np - N)))
        operands.append(b2d)

    nk = Kp // tk

    in_bytes = jnp.dtype(x2d.dtype).itemsize
    w_bytes = jnp.dtype(w.dtype).itemsize
    out_bytes = jnp.dtype(out_dtype).itemsize
    cost = pl.CostEstimate(
        flops=2 * M * N * K,
        transcendentals=0,
        bytes_accessed=in_bytes * M * K + w_bytes * N * K + out_bytes * M * N,
    )

    if nk == 1:
        # Whole K fits in one tile: skip the accumulator scratch entirely.
        grid = (Mp // tm, Np // tn)
        dims = ("parallel", "parallel")
        in_specs = [
            pl.BlockSpec((tm, tk), lambda i, j: (i, 0)),   # X tile
            pl.BlockSpec((tn, tk), lambda i, j: (j, 0)),   # W tile (N, K)
        ]
        if has_bias:
            in_specs.append(pl.BlockSpec((1, tn), lambda i, j: (0, j)))
        out_specs = pl.BlockSpec((tm, tn), lambda i, j: (i, j))
        scratch_shapes = []
        kernel = _kernel_single_bias if has_bias else _kernel_single_nobias
    else:
        grid = (Mp // tm, Np // tn, nk)
        dims = ("parallel", "parallel", "arbitrary")
        in_specs = [
            pl.BlockSpec((tm, tk), lambda i, j, k: (i, k)),   # X tile
            pl.BlockSpec((tn, tk), lambda i, j, k: (j, k)),   # W tile (N, K)
        ]
        if has_bias:
            in_specs.append(pl.BlockSpec((1, tn), lambda i, j, k: (0, j)))
        out_specs = pl.BlockSpec((tm, tn), lambda i, j, k: (i, j))
        scratch_shapes = [pltpu.VMEM((tm, tn), jnp.float32)]
        kernel = _kernel_multi_bias if has_bias else _kernel_multi_nobias

    out = pl.pallas_call(
        kernel,
        out_shape=jax.ShapeDtypeStruct((Mp, Np), out_dtype),
        grid_spec=pltpu.PrefetchScalarGridSpec(
            num_scalar_prefetch=0,
            grid=grid,
            in_specs=in_specs,
            out_specs=out_specs,
            scratch_shapes=scratch_shapes,
        ),
        compiler_params=pltpu.CompilerParams(
            dimension_semantics=dims,
            vmem_limit_bytes=64 * 1024 * 1024,
        ),
        cost_estimate=cost,
    )(*operands)

    if (Mp, Np) != (M, N):
        out = out[:M, :N]
    return out.reshape(*orig_shape[:-1], N)
    # TODO(synk): world_size > 1 would add an all-gather over the partitioned
    # N axis when gather_output=True; with a single partition it is identity.


if __name__ == "__main__":
    # Model config (world_size == 1 -> out_features_per_partition == out_features)
    in_features = 32
    out_features = 64
    batch, seq = 2, 8

    # Parameters exactly as the module's __init__ builds them.
    weight = jnp.ones((out_features, in_features), dtype=jnp.float32)
    bias = jnp.zeros((out_features,), dtype=jnp.float32)

    key = jax.random.PRNGKey(0)
    x = jax.random.normal(key, (batch, seq, in_features), dtype=jnp.float32)

    y = jax.block_until_ready(column_parallel_linear(x, weight, bias))
    y_ref = x @ weight.T + bias
    assert y.shape == (batch, seq, out_features)
    assert jnp.allclose(y, y_ref, atol=1e-5, rtol=1e-5)

    # Check 2: non-divisible shapes + nonzero params (padding path, fused bias).
    k1, k2, k3 = jax.random.split(jax.random.PRNGKey(1), 3)
    in2, out2 = 40, 200
    x2 = jax.random.normal(k1, (3, 5, in2), dtype=jnp.float32)
    w2 = jax.random.normal(k2, (out2, in2), dtype=jnp.float32) * 0.1
    b2 = jax.random.normal(k3, (out2,), dtype=jnp.float32)
    y2 = jax.block_until_ready(column_parallel_linear(x2, w2, b2))
    y2_ref = x2 @ w2.T + b2
    assert y2.shape == (3, 5, out2)
    assert jnp.allclose(y2, y2_ref, atol=1e-4, rtol=1e-4)

    # Check 3: multi-K-step accumulator path (tk forced small) + bias_term=False.
    k4, k5 = jax.random.split(jax.random.PRNGKey(2), 2)
    in3, out3 = 300, 96
    x3 = jax.random.normal(k4, (4, in3), dtype=jnp.float32)
    w3 = jax.random.normal(k5, (out3, in3), dtype=jnp.float32) * 0.05
    y3 = jax.block_until_ready(column_parallel_linear(x3, w3, None, tk=128))
    y3_ref = x3 @ w3.T
    assert y3.shape == (4, out3)
    assert jnp.allclose(y3, y3_ref, atol=1e-4, rtol=1e-4)

    print("KERNEL_OK")
</pallas_src>

<mosaic_0001>
module attributes {stable_mosaic.version = 11 : i64} {
  func.func @_kernel_single_bias(%arg0: i32, %arg1: i32, %arg2: memref<16x128xf32, #tpu.memory_space<vmem>>, %arg3: memref<128x128xf32, #tpu.memory_space<vmem>>, %arg4: memref<1x128xf32, #tpu.memory_space<vmem>>, %arg5: memref<16x128xf32, #tpu.memory_space<vmem>>) attributes {dimension_semantics = [#tpu.dimension_semantics<parallel>, #tpu.dimension_semantics<parallel>], iteration_bounds = array<i64: 1, 1>, scalar_prefetch = 0 : i64, scratch_operands = 0 : i64, tpu.core_type = #tpu.core_type<tc>, window_params = [{transform_indices = @transform_0, window_bounds = array<i64: 16, 128>}, {transform_indices = @transform_1, window_bounds = array<i64: 128, 128>}, {transform_indices = @transform_2, window_bounds = array<i64: 1, 128>}, {transform_indices = @transform_3, window_bounds = array<i64: 16, 128>}]} {
    %c0 = arith.constant 0 : index
    %c0_0 = arith.constant 0 : index
    %0 = vector.load %arg2[%c0, %c0_0] : memref<16x128xf32, #tpu.memory_space<vmem>>, vector<16x128xf32>
    %c0_1 = arith.constant 0 : index
    %c0_2 = arith.constant 0 : index
    %1 = vector.load %arg3[%c0_1, %c0_2] : memref<128x128xf32, #tpu.memory_space<vmem>>, vector<128x128xf32>
    %cst = arith.constant dense<0.000000e+00> : vector<16x128xf32>
    %2 = tpu.matmul %0, %1, %cst {dimension_numbers = #tpu.dot_dimension_numbers<[1], [1], [0], [0], [0, 0, 1, 0], [], []>} : vector<16x128xf32>, vector<128x128xf32>, vector<16x128xf32> -> vector<16x128xf32>
    %c0_3 = arith.constant 0 : index
    %c0_4 = arith.constant 0 : index
    %3 = vector.load %arg4[%c0_3, %c0_4] : memref<1x128xf32, #tpu.memory_space<vmem>>, vector<1x128xf32>
    %4 = vector.broadcast %3 : vector<1x128xf32> to vector<16x128xf32>
    %5 = arith.addf %2, %4 : vector<16x128xf32>
    %c0_5 = arith.constant 0 : index
    %c0_6 = arith.constant 0 : index
    %6 = vector.load %arg5[%c0_5, %c0_6] : memref<16x128xf32, #tpu.memory_space<vmem>>, vector<16x128xf32>
    tpu.vector_store %arg5[%c0_5, %c0_6], %5 {strides = array<i32>} : memref<16x128xf32, #tpu.memory_space<vmem>>, vector<16x128xf32>,
    return
  }
  func.func @transform_0(%arg0: i32, %arg1: i32) -> (i32, i32) {
    %c0_i32 = arith.constant 0 : i32
    %c0_i32_0 = arith.constant 0 : i32
    return %arg0, %c0_i32 : i32, i32
  }
  func.func @transform_1(%arg0: i32, %arg1: i32) -> (i32, i32) {
    %c0_i32 = arith.constant 0 : i32
    %c0_i32_0 = arith.constant 0 : i32
    return %arg1, %c0_i32 : i32, i32
  }
  func.func @transform_2(%arg0: i32, %arg1: i32) -> (i32, i32) {
    %c0_i32 = arith.constant 0 : i32
    %c0_i32_0 = arith.constant 0 : i32
    return %c0_i32, %arg1 : i32, i32
  }
  func.func @transform_3(%arg0: i32, %arg1: i32) -> (i32, i32) {
    %c0_i32 = arith.constant 0 : i32
    return %arg0, %arg1 : i32, i32
  }
}

</mosaic_0001>

<llo_original>
// kernel: column_parallel_linear.1
$region0: #{column_parallel_linear.1}
  #allocation0 [shape = 'u32[]', space=smem, size = 0x4, offset = 0x4, fixed_abs, tag = 'smem constant byte address 0x4 - core index']
  #allocation1 [shape = 'u32[72,128]{1,0:T(1,128)}', space=vmem, size = 0x9000, scoped, tag = 'internal scratch']
  %s0 = inlined_call_operand.vmem [shape: f32[16,128], index: 0, kind: input, shape index: {}]
  %s1 = inlined_call_operand.vmem [shape: f32[128,128], index: 1, kind: input, shape index: {}]
  %s2 = inlined_call_operand.vmem [shape: f32[1,128], index: 2, kind: input, shape index: {}]
  %s3 = inlined_call_operand.vmem [shape: f32[16,128], index: 3, kind: output, shape index: {}]
  %s4 = sld [smem:[#allocation0]]
  $region22: #{column_parallel_linear.1} parent=0
    _
  %s6 = ssub.s32 1, %s4
  %s7 = scalar_select 0, %s6, %s4
  // Predicated region
  $region2: #{column_parallel_linear.1} parent=0 // pred_check
    _
  $region3: #{column_parallel_linear.1} parent=0 // pred_check_branch
    %9 = sbr.rel (0) target = $region5
  $region4: #{column_parallel_linear.1} parent=0 // pred_region
    _
  $region5: #{column_parallel_linear.1} parent=0 // pred_fallthru
    _
  // Predicated region
  $region6: #{column_parallel_linear.1} parent=0 // pred_check
    _
  $region7: #{column_parallel_linear.1} parent=0 // pred_check_branch
    %11 = sbr.rel (0) target = $region9
  $region8: #{column_parallel_linear.1} parent=0 // pred_region
    _
  $region9: #{column_parallel_linear.1} parent=0 // pred_fallthru
    _
  // Predicated region
  $region10: #{column_parallel_linear.1} parent=0 // pred_check
    _
  $region11: #{column_parallel_linear.1} parent=0 // pred_check_branch
    %13 = sbr.rel (0) target = $region13
  $region12: #{column_parallel_linear.1} parent=0 // pred_region
    _
  $region13: #{column_parallel_linear.1} parent=0 // pred_fallthru
    _
  %v14 = vld [vmem:[%s0] sm:$0xff]
  %v15 = vld [vmem:[%s0 + $0x8] sm:$0xff]
  %v16 = vld [vmem:[%s1] sm:$0xff]
  %v17 = vld [vmem:[%s1 + $0x8] sm:$0xff]
  %v18 = vld [vmem:[%s1 + $0x10] sm:$0xff]
  %v19 = vld [vmem:[%s1 + $0x18] sm:$0xff]
  %v20 = vld [vmem:[%s1 + $0x20] sm:$0xff]
  %v21 = vld [vmem:[%s1 + $0x28] sm:$0xff]
  %v22 = vld [vmem:[%s1 + $0x30] sm:$0xff]
  %v23 = vld [vmem:[%s1 + $0x38] sm:$0xff]
  %v24 = vld [vmem:[%s1 + $0x40] sm:$0xff]
  %v25 = vld [vmem:[%s1 + $0x48] sm:$0xff]
  %v26 = vld [vmem:[%s1 + $0x50] sm:$0xff]
  %v27 = vld [vmem:[%s1 + $0x58] sm:$0xff]
  %v28 = vld [vmem:[%s1 + $0x60] sm:$0xff]
  %v29 = vld [vmem:[%s1 + $0x68] sm:$0xff]
  %v30 = vld [vmem:[%s1 + $0x70] sm:$0xff]
  %v31 = vld [vmem:[%s1 + $0x78] sm:$0xff]
  %v32 = vld [vmem:[%s2] sm:$0x1]
  %v34 = vperm.slane %v32, 0
  %36 = vmatpush.xpose.msra.mxu0 %v31
  %37 = vmatpush.xpose.msra.mxu0 %v30
  %38 = vmatpush.xpose.msra.mxu0 %v29
  %39 = vmatpush.xpose.msra.mxu0 %v28
  %40 = vmatpush.xpose.msra.mxu0 %v27
  %41 = vmatpush.xpose.msra.mxu0 %v26
  %42 = vmatpush.xpose.msra.mxu0 %v25
  %43 = vmatpush.xpose.msra.mxu0 %v24
  %44 = vmatpush.xpose.msra.mxu0 %v23
  %45 = vmatpush.xpose.msra.mxu0 %v22
  %46 = vmatpush.xpose.msra.mxu0 %v21
  %47 = vmatpush.xpose.msra.mxu0 %v20
  %48 = vmatpush.xpose.msra.mxu0 %v19
  %49 = vmatpush.xpose.msra.mxu0 %v18
  %50 = vmatpush.xpose.msra.mxu0 %v17
  %51 = vmatpush.xpose.msra.mxu0 %v16
  %52 = vmatmul.f32.gmra.mxu0 %v14
  %v53 = vpop.f32.mrf.mxu0
  %v54 = vadd.f32 %v34, %v53
  %55 = vmatmul.f32.gmra.mxu0 %v15
  %v56 = vpop.f32.mrf.mxu0
  %v57 = vadd.f32 %v34, %v56
  %58 = vdwg.mxu0
  %59 = vst [vmem:[%s3] sm:$0xff] %v54
  %60 = vst [vmem:[%s3 + $0x8] sm:$0xff] %v57
  // Predicated region
  $region14: #{column_parallel_linear.1} parent=0 // pred_check
    _
  $region15: #{column_parallel_linear.1} parent=0 // pred_check_branch
    %62 = sbr.rel (0) target = $region17
  $region16: #{column_parallel_linear.1} parent=0 // pred_region
    _
  $region17: #{column_parallel_linear.1} parent=0 // pred_fallthru
    _
  // Predicated region
  $region18: #{column_parallel_linear.1} parent=0 // pred_check
    _
  $region19: #{column_parallel_linear.1} parent=0 // pred_check_branch
    %64 = sbr.rel (0) target = $region21
  $region20: #{column_parallel_linear.1} parent=0 // pred_region
    _
  $region21: #{column_parallel_linear.1} parent=0 // pred_fallthru
    _

</llo_original>
